<compile_context>
chip_gen: v7x
topology: tpu7x:2x2x1
jax: 0.10.0
libtpu: 0.0.40
codegen_flags: <defaults>
</compile_context>

<pallas_src>
import functools

import jax
import jax.numpy as jnp
from jax.experimental import pallas as pl
from jax.experimental.pallas import tpu as pltpu


def _cdiv(a, b):
    return -(-a // b)


def _round_up(a, b):
    return _cdiv(a, b) * b


def _tile_bytes(rows, cols, itemsize):
    """Approximate VMEM footprint of a 2-D slab after (8, 128) tiling."""
    return _round_up(max(rows, 1), 8) * _round_up(max(cols, 1), 128) * itemsize


def _conv_bn_relu_kernel(x_ref, w_ref, shift_ref, o_ref, *,
                         tap_offsets, tq, stride, cin, per_tap):
    """x_ref:  [R_pad, Cin]            f32  (whole padded image, resident across chunks)
       w_ref:  [KH*KW*Cin, Cout_p]     bf16 (BN scale folded in)
       shift_ref: [1, Cout_p]          f32  (BN shift)
       o_ref:  [tq, Cout_p]            bf16 (one row-chunk of virtual output rows)
    """
    q0 = pl.multiple_of(pl.program_id(1) * tq, 8)   # first virtual output row of chunk

    def tap_rows(off):
        # Rows needed by tap `off` for the tq output rows of this chunk.
        if stride == 1:
            return x_ref[pl.ds(q0 + off, tq), :]
        return x_ref[pl.ds(q0 * stride + off, tq, stride=stride), :]

    if per_tap:
        # Cin >= 128: each tap already has an MXU-sized contraction; accumulate
        # per tap, initialising from the first tap's dot (no zeros + add).
        acc = jnp.dot(tap_rows(tap_offsets[0]).astype(jnp.bfloat16),
                      w_ref[pl.ds(0, cin), :],
                      preferred_element_type=jnp.float32)
        for t in range(1, len(tap_offsets)):
            acc += jnp.dot(tap_rows(tap_offsets[t]).astype(jnp.bfloat16),
                           w_ref[pl.ds(t * cin, cin), :],
                           preferred_element_type=jnp.float32)
        y = acc
    else:
        # Small Cin: gather the KH*KW taps into one [tq, KH*KW*Cin] LHS (cheap
        # shifted sublane slices + lane concat), cast ONCE to bf16, and do a
        # single MXU matmul with K = KH*KW*Cin.
        lhs = jnp.concatenate([tap_rows(off) for off in tap_offsets], axis=-1)
        y = jnp.dot(lhs.astype(jnp.bfloat16), w_ref[...],
                    preferred_element_type=jnp.float32)

    y = jnp.maximum(y + shift_ref[...], 0.0)        # BN shift + ReLU in f32
    o_ref[...] = y.astype(o_ref.dtype)              # bf16 lane-dense store


def conv_bn_relu(x_nchw, weight, gamma, beta, running_mean, running_var, *,
                 stride=1, padding=0, dilation=1, eps=1e-5, groups=1,
                 tq_max=256):
    """Fused Conv2d(bias=False) + BatchNorm2d(inference running stats) + ReLU.

    x_nchw : [N, Cin, H, W]      (PyTorch layout)
    weight : [Cout, Cin, KH, KW] (PyTorch layout)
    Returns [N, Cout, OH, OW] float32.
    """
    # TODO(synk): groups != 1 (grouped conv) not implemented; module default is groups=1.
    assert groups == 1
    # TODO(synk): training-mode BatchNorm (batch statistics) not implemented; uses running stats.
    N, Cin, H, W = x_nchw.shape
    Cout, Cin_w, KH, KW = weight.shape
    assert Cin == Cin_w
    assert stride >= 1 and dilation >= 1

    OH = (H + 2 * padding - dilation * (KH - 1) - 1) // stride + 1
    OW = (W + 2 * padding - dilation * (KW - 1) - 1) // stride + 1
    Hp, Wp = H + 2 * padding, W + 2 * padding

    # Round Wp up to a sublane multiple only when the extra wasted rows are small
    # (<= ~12.5%): keeps the kh*Wp tap-offset component 8-aligned.
    Wp8 = _round_up(Wp, 8)
    Wp_eff = Wp8 if (Wp8 - Wp) * 8 <= Wp else Wp

    # ---- glue: NCHW -> NHWC, spatial pad, flatten spatial rows (no im2col) ----
    x_nhwc = jnp.transpose(x_nchw, (0, 2, 3, 1)).astype(jnp.float32)
    xp = jnp.pad(x_nhwc, ((0, 0), (padding, padding),
                          (padding, padding + (Wp_eff - Wp)), (0, 0)))
    X2 = xp.reshape(N, Hp * Wp_eff, Cin)                  # [N, Hp*Wp_eff, Cin]

    # Virtual output rows q = oh*Wp_eff + ow' (ow' < OW are the valid columns).
    OHV = OH * Wp_eff
    n_chunks = _cdiv(OHV, tq_max)
    tq = _round_up(_cdiv(OHV, n_chunks), 8)
    OHV_pad = n_chunks * tq

    tap_offsets = tuple(kh * dilation * Wp_eff + kw * dilation
                        for kh in range(KH) for kw in range(KW))
    max_off = max(tap_offsets)
    R_need = max(OHV_pad * stride + max_off, Hp * Wp_eff)
    R_pad = _round_up(R_need, 8)
    X2 = jnp.pad(X2, ((0, 0), (0, R_pad - Hp * Wp_eff), (0, 0)))   # zero tail rows

    # Lane-dense output channels.
    Cout_p = _round_up(Cout, 128)
    Kdim = KH * KW * Cin

    # Fold BN (inference) into per-channel scale/shift; fold the scale into the weight.
    inv_std = jax.lax.rsqrt(running_var.astype(jnp.float32) + eps)
    scale = gamma.astype(jnp.float32) * inv_std
    shift = beta.astype(jnp.float32) - running_mean.astype(jnp.float32) * scale

    # [Cout, Cin, KH, KW] -> [KH, KW, Cin, Cout] -> [KH*KW*Cin, Cout_p], scale folded in.
    Wm = jnp.transpose(weight.astype(jnp.float32), (2, 3, 1, 0)) * scale[None, None, None, :]
    Wm = Wm.reshape(Kdim, Cout)
    Wm = jnp.pad(Wm, ((0, 0), (0, Cout_p - Cout))).astype(jnp.bfloat16)
    shift_p = jnp.pad(shift, (0, Cout_p - Cout)).reshape(1, Cout_p).astype(jnp.float32)

    per_tap = Cin >= 128   # per-tap accumulate only when each tap already fills the MXU K dim
    kernel = functools.partial(_conv_bn_relu_kernel,
                               tap_offsets=tap_offsets, tq=tq, stride=stride,
                               cin=Cin, per_tap=per_tap)

    # True useful work (not padded sizes) for the scheduler hint.
    flops = 2 * N * OH * OW * Cin * Cout * KH * KW
    bytes_accessed = (N * Cin * H * W * 4 + Wm.size * 2 + shift_p.size * 4
                      + N * OH * OW * Cout * 2)

    # Explicit scoped-VMEM budget: double-buffered blocks + live temporaries + headroom.
    x_blk = _tile_bytes(R_pad, Cin, 4)
    w_blk = _tile_bytes(Kdim, Cout_p, 2)
    s_blk = _tile_bytes(1, Cout_p, 4)
    o_blk = _tile_bytes(tq, Cout_p, 2)
    tmp = _tile_bytes(tq, Kdim, 4) + _tile_bytes(tq, Cout_p, 4)
    vmem_limit = int(min(max(2 * (x_blk + w_blk + s_blk + o_blk) + tmp + (2 << 20),
                             16 << 20), 64 << 20))

    out = pl.pallas_call(
        kernel,
        out_shape=jax.ShapeDtypeStruct((N, OHV_pad, Cout_p), jnp.bfloat16),
        grid_spec=pltpu.PrefetchScalarGridSpec(
            num_scalar_prefetch=0,
            grid=(N, n_chunks),
            in_specs=[
                # Padded image: constant block index across the chunk axis -> stays
                # resident in VMEM for all chunks of the same image.
                pl.BlockSpec((None, R_pad, Cin), lambda n, c: (n, 0, 0)),
                pl.BlockSpec((Kdim, Cout_p), lambda n, c: (0, 0)),     # folded weights
                pl.BlockSpec((1, Cout_p), lambda n, c: (0, 0)),        # BN shift
            ],
            out_specs=pl.BlockSpec((None, tq, Cout_p), lambda n, c: (n, c, 0)),
        ),
        compiler_params=pltpu.CompilerParams(
            dimension_semantics=("parallel", "parallel"),
            vmem_limit_bytes=vmem_limit),
        cost_estimate=pl.CostEstimate(flops=flops, transcendentals=0,
                                      bytes_accessed=bytes_accessed),
    )(X2, Wm, shift_p)

    # Drop padded rows/cols: keep valid virtual rows, columns ow' < OW, channels < Cout.
    y = out[:, :OHV, :Cout].reshape(N, OH, Wp_eff, Cout)[:, :, :OW, :]
    return jnp.transpose(y, (0, 3, 1, 2)).astype(jnp.float32)      # back to NCHW, f32


if __name__ == "__main__":
    key = jax.random.PRNGKey(0)
    k_x, k_w, k_g, k_b, k_m, k_v = jax.random.split(key, 6)

    # Shapes consistent with the module: ConvBnRelu(4, 8, 3, stride=1, padding=1)
    N, Cin, H, W = 2, 4, 16, 16
    Cout, KH, KW = 8, 3, 3
    stride, padding, dilation = 1, 1, 1

    x = jax.random.normal(k_x, (N, Cin, H, W), dtype=jnp.float32)
    weight = jax.random.normal(k_w, (Cout, Cin, KH, KW), dtype=jnp.float32) * 0.1
    gamma = 1.0 + 0.1 * jax.random.normal(k_g, (Cout,), dtype=jnp.float32)
    beta = 0.1 * jax.random.normal(k_b, (Cout,), dtype=jnp.float32)
    running_mean = 0.1 * jax.random.normal(k_m, (Cout,), dtype=jnp.float32)
    running_var = jnp.abs(1.0 + 0.1 * jax.random.normal(k_v, (Cout,), dtype=jnp.float32))

    fn = functools.partial(conv_bn_relu, stride=stride, padding=padding, dilation=dilation)
    y = jax.jit(fn)(x, weight, gamma, beta, running_mean, running_var)
    jax.block_until_ready(y)

    # Pure-JAX reference (f32).
    ref_conv = jax.lax.conv_general_dilated(
        x, weight, window_strides=(stride, stride),
        padding=((padding, padding), (padding, padding)),
        rhs_dilation=(dilation, dilation),
        dimension_numbers=("NCHW", "OIHW", "NCHW"))
    inv_std = 1.0 / jnp.sqrt(running_var + 1e-5)
    ref = jnp.maximum(
        (ref_conv - running_mean[None, :, None, None]) * (gamma * inv_std)[None, :, None, None]
        + beta[None, :, None, None], 0.0)

    assert y.shape == (N, Cout, H, W)
    # bf16 matmul operands + bf16 output store (f32 accumulation) -> loose tolerance
    # vs the f32 reference.
    assert jnp.allclose(y, ref, atol=5e-2, rtol=5e-2)

    print("KERNEL_OK")
</pallas_src>

<mosaic_0001>
module attributes {stable_mosaic.version = 11 : i64} {
  func.func @_conv_bn_relu_kernel(%arg0: i32, %arg1: i32, %arg2: memref<1x328x4xf32, #tpu.memory_space<vmem>>, %arg3: memref<36x128xbf16, #tpu.memory_space<vmem>>, %arg4: memref<1x128xf32, #tpu.memory_space<vmem>>, %arg5: memref<1x144x128xbf16, #tpu.memory_space<vmem>>) attributes {dimension_semantics = [#tpu.dimension_semantics<parallel>, #tpu.dimension_semantics<parallel>], iteration_bounds = array<i64: 2, 2>, scalar_prefetch = 0 : i64, scratch_operands = 0 : i64, tpu.core_type = #tpu.core_type<tc>, window_params = [{transform_indices = @transform_0, window_bounds = array<i64: 1, 328, 4>}, {pipeline_mode = #tpu.pipeline_mode<synchronous>, transform_indices = @transform_1, window_bounds = array<i64: 36, 128>}, {pipeline_mode = #tpu.pipeline_mode<synchronous>, transform_indices = @transform_2, window_bounds = array<i64: 1, 128>}, {transform_indices = @transform_3, window_bounds = array<i64: 1, 144, 128>}]} {
    %c144_i32 = arith.constant 144 : i32
    %0 = arith.muli %arg1, %c144_i32 : i32
    %1 = tpu.assume_multiple %0, 8 : i32
    %c0_i32 = arith.constant 0 : i32
    %2 = arith.addi %1, %c0_i32 : i32
    %c0 = arith.constant 0 : index
    %3 = arith.index_cast %2 : i32 to index
    %c0_0 = arith.constant 0 : index
    %4 = vector.load %arg2[%c0, %3, %c0_0] : memref<1x328x4xf32, #tpu.memory_space<vmem>>, vector<1x144x4xf32>
    %5 = vector.shape_cast %4 : vector<1x144x4xf32> to vector<144x4xf32>
    %c1_i32 = arith.constant 1 : i32
    %6 = arith.addi %1, %c1_i32 : i32
    %c0_1 = arith.constant 0 : index
    %7 = arith.index_cast %6 : i32 to index
    %c0_2 = arith.constant 0 : index
    %8 = vector.load %arg2[%c0_1, %7, %c0_2] : memref<1x328x4xf32, #tpu.memory_space<vmem>>, vector<1x144x4xf32>
    %9 = vector.shape_cast %8 : vector<1x144x4xf32> to vector<144x4xf32>
    %c2_i32 = arith.constant 2 : i32
    %10 = arith.addi %1, %c2_i32 : i32
    %c0_3 = arith.constant 0 : index
    %11 = arith.index_cast %10 : i32 to index
    %c0_4 = arith.constant 0 : index
    %12 = vector.load %arg2[%c0_3, %11, %c0_4] : memref<1x328x4xf32, #tpu.memory_space<vmem>>, vector<1x144x4xf32>
    %13 = vector.shape_cast %12 : vector<1x144x4xf32> to vector<144x4xf32>
    %c18_i32 = arith.constant 18 : i32
    %14 = arith.addi %1, %c18_i32 : i32
    %c0_5 = arith.constant 0 : index
    %15 = arith.index_cast %14 : i32 to index
    %c0_6 = arith.constant 0 : index
    %16 = vector.load %arg2[%c0_5, %15, %c0_6] : memref<1x328x4xf32, #tpu.memory_space<vmem>>, vector<1x144x4xf32>
    %17 = vector.shape_cast %16 : vector<1x144x4xf32> to vector<144x4xf32>
    %c19_i32 = arith.constant 19 : i32
    %18 = arith.addi %1, %c19_i32 : i32
    %c0_7 = arith.constant 0 : index
    %19 = arith.index_cast %18 : i32 to index
    %c0_8 = arith.constant 0 : index
    %20 = vector.load %arg2[%c0_7, %19, %c0_8] : memref<1x328x4xf32, #tpu.memory_space<vmem>>, vector<1x144x4xf32>
    %21 = vector.shape_cast %20 : vector<1x144x4xf32> to vector<144x4xf32>
    %c20_i32 = arith.constant 20 : i32
    %22 = arith.addi %1, %c20_i32 : i32
    %c0_9 = arith.constant 0 : index
    %23 = arith.index_cast %22 : i32 to index
    %c0_10 = arith.constant 0 : index
    %24 = vector.load %arg2[%c0_9, %23, %c0_10] : memref<1x328x4xf32, #tpu.memory_space<vmem>>, vector<1x144x4xf32>
    %25 = vector.shape_cast %24 : vector<1x144x4xf32> to vector<144x4xf32>
    %c36_i32 = arith.constant 36 : i32
    %26 = arith.addi %1, %c36_i32 : i32
    %c0_11 = arith.constant 0 : index
    %27 = arith.index_cast %26 : i32 to index
    %c0_12 = arith.constant 0 : index
    %28 = vector.load %arg2[%c0_11, %27, %c0_12] : memref<1x328x4xf32, #tpu.memory_space<vmem>>, vector<1x144x4xf32>
    %29 = vector.shape_cast %28 : vector<1x144x4xf32> to vector<144x4xf32>
    %c37_i32 = arith.constant 37 : i32
    %30 = arith.addi %1, %c37_i32 : i32
    %c0_13 = arith.constant 0 : index
    %31 = arith.index_cast %30 : i32 to index
    %c0_14 = arith.constant 0 : index
    %32 = vector.load %arg2[%c0_13, %31, %c0_14] : memref<1x328x4xf32, #tpu.memory_space<vmem>>, vector<1x144x4xf32>
    %33 = vector.shape_cast %32 : vector<1x144x4xf32> to vector<144x4xf32>
    %c38_i32 = arith.constant 38 : i32
    %34 = arith.addi %1, %c38_i32 : i32
    %c0_15 = arith.constant 0 : index
    %35 = arith.index_cast %34 : i32 to index
    %c0_16 = arith.constant 0 : index
    %36 = vector.load %arg2[%c0_15, %35, %c0_16] : memref<1x328x4xf32, #tpu.memory_space<vmem>>, vector<1x144x4xf32>
    %37 = vector.shape_cast %36 : vector<1x144x4xf32> to vector<144x4xf32>
    %38 = tpu.concatenate %5, %9, %13, %17, %21, %25, %29, %33, %37 in 1 : vector<144x4xf32>, vector<144x4xf32>, vector<144x4xf32>, vector<144x4xf32>, vector<144x4xf32>, vector<144x4xf32>, vector<144x4xf32>, vector<144x4xf32>, vector<144x4xf32> -> vector<144x36xf32>
    %39 = arith.truncf %38 : vector<144x36xf32> to vector<144x36xbf16>
    %c0_17 = arith.constant 0 : index
    %c0_18 = arith.constant 0 : index
    %40 = vector.load %arg3[%c0_17, %c0_18] : memref<36x128xbf16, #tpu.memory_space<vmem>>, vector<36x128xbf16>
    %cst = arith.constant dense<0.000000e+00> : vector<144x128xf32>
    %41 = tpu.matmul %39, %40, %cst {dimension_numbers = #tpu.dot_dimension_numbers<[1], [0], [0], [1], [0, 0, 1, 1], [], []>} : vector<144x36xbf16>, vector<36x128xbf16>, vector<144x128xf32> -> vector<144x128xf32>
    %c0_19 = arith.constant 0 : index
    %c0_20 = arith.constant 0 : index
    %42 = vector.load %arg4[%c0_19, %c0_20] : memref<1x128xf32, #tpu.memory_space<vmem>>, vector<1x128xf32>
    %43 = vector.broadcast %42 : vector<1x128xf32> to vector<144x128xf32>
    %44 = arith.addf %41, %43 : vector<144x128xf32>
    %cst_21 = arith.constant 0.000000e+00 : f32
    %45 = vector.broadcast %cst_21 : f32 to vector<144x128xf32>
    %46 = arith.maximumf %44, %45 : vector<144x128xf32>
    %47 = arith.truncf %46 : vector<144x128xf32> to vector<144x128xbf16>
    %c0_22 = arith.constant 0 : index
    %c0_23 = arith.constant 0 : index
    %c0_24 = arith.constant 0 : index
    %48 = vector.load %arg5[%c0_22, %c0_23, %c0_24] : memref<1x144x128xbf16, #tpu.memory_space<vmem>>, vector<1x144x128xbf16>
    %49 = vector.shape_cast %48 : vector<1x144x128xbf16> to vector<144x128xbf16>
    %50 = vector.shape_cast %47 : vector<144x128xbf16> to vector<1x144x128xbf16>
    tpu.vector_store %arg5[%c0_22, %c0_23, %c0_24], %50 {strides = array<i32>} : memref<1x144x128xbf16, #tpu.memory_space<vmem>>, vector<1x144x128xbf16>,
    return
  }
  func.func @transform_0(%arg0: i32, %arg1: i32) -> (i32, i32, i32) {
    %c0_i32 = arith.constant 0 : i32
    %c0_i32_0 = arith.constant 0 : i32
    %c0_i32_1 = arith.constant 0 : i32
    return %arg0, %c0_i32, %c0_i32_0 : i32, i32, i32
  }
  func.func @transform_1(%arg0: i32, %arg1: i32) -> (i32, i32) {
    %c0_i32 = arith.constant 0 : i32
    %c0_i32_0 = arith.constant 0 : i32
    %c0_i32_1 = arith.constant 0 : i32
    return %c0_i32, %c0_i32_0 : i32, i32
  }
  func.func @transform_2(%arg0: i32, %arg1: i32) -> (i32, i32) {
    %c0_i32 = arith.constant 0 : i32
    %c0_i32_0 = arith.constant 0 : i32
    %c0_i32_1 = arith.constant 0 : i32
    return %c0_i32, %c0_i32_0 : i32, i32
  }
  func.func @transform_3(%arg0: i32, %arg1: i32) -> (i32, i32, i32) {
    %c0_i32 = arith.constant 0 : i32
    %c0_i32_0 = arith.constant 0 : i32
    return %arg0, %arg1, %c0_i32 : i32, i32, i32
  }
}

</mosaic_0001>

<llo_original>
// kernel: conv_bn_relu.1
$region0: #{conv_bn_relu.1}
  #allocation0 [shape = 'u32[]', space=smem, size = 0x4, offset = 0x4, fixed_abs, tag = 'smem constant byte address 0x4 - core index']
  #allocation1 [shape = 'u32[144,128]{1,0:T(1,128)}', space=vmem, size = 0x12000, scoped, tag = 'internal scratch']
  %s0 = inlined_call_operand.vmem [shape: f32[2,328,4], index: 0, kind: input, shape index: {}]
  %s1 = inlined_call_operand.vmem [shape: bf16[36,128], index: 1, kind: input, shape index: {}]
  %s2 = inlined_call_operand.vmem [shape: f32[1,128], index: 2, kind: input, shape index: {}]
  %s3 = inlined_call_operand.vmem [shape: bf16[2,288,128], index: 3, kind: output, shape index: {}]
  %s4 = sld [smem:[#allocation0]]
  $region45: #{conv_bn_relu.1} parent=0
    _
  %s6 = ssub.s32 1, %s4
  %s7 = scalar_select 0, %s6, %s4
  loop: start=0, step=1, limit=6
  $region2: #{conv_bn_relu.1} parent=0 // loop_pre_header
    _
  $region3: #{conv_bn_relu.1} parent=0 // loop_header
    %s9 = sphi 0, %s13
    %p10 = scmp.ge.s32.totalorder %s9, 6
    %s16 = sphi 0, %s28
    %s17 = sphi 0, %s24
    %s18 = sphi 0, %s16
    %s19 = sphi 0, %s17
    %s20 = sphi 0, %s18
    %s21 = sphi 0, %s19
    %s31 = sphi 0, %s33
    %s34 = sphi 0, %s31
    %s35 = sphi 0, %s34
    %s51 = sphi 0, %s35
    %s55 = sphi 0, %s55
    %s57 = sphi 0, %s55
    %s58 = sphi 0, %s57
    %s72 = sphi 0, %s58
    %s76 = sphi 0, %s76
    %s78 = sphi 0, %s76
    %s79 = sphi 0, %s78
    %s93 = sphi 0, %s79
    %s101 = sphi 0, %s103
    %s104 = sphi 0, %s101
    %s105 = sphi 0, %s104
    %s121 = sphi 0, %s105
  $region4: #{conv_bn_relu.1} parent=0 // loop_header_branch
    %12 = sbr.rel (%p10) target = $region8
  $region5: #{conv_bn_relu.1} parent=0 // loop_body
    %s14 = ssub.s32 %s9, 1
    %s15 = ssub.s32 %s9, 2
    %s22 = sadd.s32 1, %s17
    %p23 = scmp.ge.s32.totalorder %s22, 2
    %s24 = scalar_select %p23, 0, %s22
    %s25 = sadd.s32 1, %s16
    %s26 = scalar_select %p23, %s25, %s16
    %p27 = scmp.ge.s32.totalorder %s26, 2
    %s28 = scalar_select %p27, 0, %s26
    %s29 = ssub.s32 %s16, %s28
    %p30 = scmp.eq.s32.totalorder %s29, 0
    %s32 = sadd.s32 %s31, 1
    %s33 = scalar_select %p30, %s31, %s32
    %p36 = pneg %p30
    %p37 = scmp.eq.s32.totalorder %s9, 3
    %p38 = por %p36, %p37
    %p39 = scmp.ne.s32.totalorder %s31, %s34
    %p40 = scmp.eq.s32.totalorder %s9, 0
    %p41 = por %p39, %p40
    %p42 = scmp.ne.s32.totalorder %s31, %s34
    %p43 = scmp.eq.s32.totalorder %s14, 3
    %p44 = por %p42, %p43
    %p45 = scmp.ne.s32.totalorder %s34, %s35
    %p46 = scmp.eq.s32.totalorder %s14, 0
    %p47 = por %p45, %p46
    %p48 = scmp.ne.s32.totalorder %s34, %s35
    %p49 = scmp.eq.s32.totalorder %s15, 3
    %p50 = por %p48, %p49
    %p52 = scmp.ne.s32.totalorder %s35, %s51
    %p53 = scmp.eq.s32.totalorder %s15, 0
    %p54 = por %p52, %p53
    %s56 = sadd.s32 %s55, 1
    %p59 = scmp.eq.s32.totalorder %s9, 3
    %p60 = scmp.ne.s32.totalorder %s55, %s57
    %p61 = scmp.eq.s32.totalorder %s9, 0
    %p62 = por %p60, %p61
    %p63 = scmp.ne.s32.totalorder %s55, %s57
    %p64 = scmp.eq.s32.totalorder %s14, 3
    %p65 = por %p63, %p64
    %p66 = scmp.ne.s32.totalorder %s57, %s58
    %p67 = scmp.eq.s32.totalorder %s14, 0
    %p68 = por %p66, %p67
    %p69 = scmp.ne.s32.totalorder %s57, %s58
    %p70 = scmp.eq.s32.totalorder %s15, 3
    %p71 = por %p69, %p70
    %p73 = scmp.ne.s32.totalorder %s58, %s72
    %p74 = scmp.eq.s32.totalorder %s15, 0
    %p75 = por %p73, %p74
    %s77 = sadd.s32 %s76, 1
    %p80 = scmp.eq.s32.totalorder %s9, 3
    %p81 = scmp.ne.s32.totalorder %s76, %s78
    %p82 = scmp.eq.s32.totalorder %s9, 0
    %p83 = por %p81, %p82
    %p84 = scmp.ne.s32.totalorder %s76, %s78
    %p85 = scmp.eq.s32.totalorder %s14, 3
    %p86 = por %p84, %p85
    %p87 = scmp.ne.s32.totalorder %s78, %s79
    %p88 = scmp.eq.s32.totalorder %s14, 0
    %p89 = por %p87, %p88
    %p90 = scmp.ne.s32.totalorder %s78, %s79
    %p91 = scmp.eq.s32.totalorder %s15, 3
    %p92 = por %p90, %p91
    %p94 = scmp.ne.s32.totalorder %s79, %s93
    %p95 = scmp.eq.s32.totalorder %s15, 0
    %p96 = por %p94, %p95
    %s97 = ssub.s32 %s16, %s28
    %s98 = ssub.s32 %s17, %s24
    %s99 = sor.u32 %s97, %s98
    %p100 = scmp.eq.s32.totalorder %s99, 0
    %s102 = sadd.s32 %s101, 1
    %s103 = scalar_select %p100, %s101, %s102
    %p106 = pneg %p100
    %p107 = scmp.eq.s32.totalorder %s9, 3
    %p108 = por %p106, %p107
    %p109 = scmp.ne.s32.totalorder %s101, %s104
    %p110 = scmp.eq.s32.totalorder %s9, 0
    %p111 = por %p109, %p110
    %p112 = scmp.ne.s32.totalorder %s101, %s104
    %p113 = scmp.eq.s32.totalorder %s14, 3
    %p114 = por %p112, %p113
    %p115 = scmp.ne.s32.totalorder %s104, %s105
    %p116 = scmp.eq.s32.totalorder %s14, 0
    %p117 = por %p115, %p116
    %p118 = scmp.ne.s32.totalorder %s104, %s105
    %p119 = scmp.eq.s32.totalorder %s15, 3
    %p120 = por %p118, %p119
    %p122 = scmp.ne.s32.totalorder %s105, %s121
    %p123 = scmp.eq.s32.totalorder %s15, 0
    %p124 = por %p122, %p123
    %p125 = scmp.le.s32.totalorder 1, %s9
    %p126 = scmp.lt.s32.totalorder %s9, 5
    %p127 = pnand %p125, %p126
    %p128 = pneg %p127
    // Predicated region
    $region9: #{conv_bn_relu.1} parent=5 // pred_check
      _
    $region10: #{conv_bn_relu.1} parent=5 // pred_check_branch
      %130 = sbr.rel (%p127) target = $region12
    $region11: #{conv_bn_relu.1} parent=5 // pred_region
      %s131 = ssub.s32 %s9, 1
      // Predicated region
      $region13: #{conv_bn_relu.1} parent=11 // pred_check
        %p132 = pneg %p68
      $region14: #{conv_bn_relu.1} parent=11 // pred_check_branch
        %134 = sbr.rel (%p132) target = $region16
      $region15: #{conv_bn_relu.1} parent=11 // pred_region
        _
      $region16: #{conv_bn_relu.1} parent=11 // pred_fallthru
        _
      // Predicated region
      $region17: #{conv_bn_relu.1} parent=11 // pred_check
        %p135 = pneg %p89
      $region18: #{conv_bn_relu.1} parent=11 // pred_check_branch
        %137 = sbr.rel (%p135) target = $region20
      $region19: #{conv_bn_relu.1} parent=11 // pred_region
        _
      $region20: #{conv_bn_relu.1} parent=11 // pred_fallthru
        _
    $region12: #{conv_bn_relu.1} parent=5 // pred_fallthru
      _
    %p138 = scmp.lt.s32.totalorder %s9, 4
    // Predicated region
    $region21: #{conv_bn_relu.1} parent=5 // pred_check
      %p139 = pneg %p138
    $region22: #{conv_bn_relu.1} parent=5 // pred_check_branch
      %141 = sbr.rel (%p139) target = $region24
    $region23: #{conv_bn_relu.1} parent=5 // pred_region
      // Predicated region
      $region25: #{conv_bn_relu.1} parent=23 // pred_check
        %p142 = pneg %p41
      $region26: #{conv_bn_relu.1} parent=23 // pred_check_branch
        %144 = sbr.rel (%p142) target = $region28
      $region27: #{conv_bn_relu.1} parent=23 // pred_region
        %p145 = scmp.lt.s32.totalorder %s16, 1
        %s146 = scalar_select %p145, %s16, 1
        %s147 = smul.addr %s146, 41
        %s148 = smul.addr %s147, 8
        %s149 = scalar_lea.vmem %s0, %s148
      $region28: #{conv_bn_relu.1} parent=23 // pred_fallthru
        _
    $region24: #{conv_bn_relu.1} parent=5 // pred_fallthru
      _
    %p150 = scmp.le.s32.totalorder 1, %s9
    %p151 = scmp.lt.s32.totalorder %s9, 5
    %p152 = pnand %p150, %p151
    %p153 = pneg %p152
    // Predicated region
    $region29: #{conv_bn_relu.1} parent=5 // pred_check
      _
    $region30: #{conv_bn_relu.1} parent=5 // pred_check_branch
      %155 = sbr.rel (%p152) target = $region32
    $region31: #{conv_bn_relu.1} parent=5 // pred_region
      %s156 = ssub.s32 %s9, 1
      %p157 = scmp.lt.s32.totalorder %s18, 1
      %s158 = scalar_select %p157, %s18, 1
      %s159 = smul.addr %s158, 41
      %s160 = smul.addr %s159, 8
      %s161 = scalar_lea.vmem %s0, %s160
      %p162 = pneg %p47
      %p163 = pneg %p44
      %p164 = pneg %p68
      %p165 = pneg %p65
      %p166 = pneg %p89
      %p167 = pneg %p86
      %p168 = pneg %p117
      %p169 = pneg %p114
      %s170 = smul.u32 18, %s19
      %p171 = scmp.lt.s32.totalorder %s18, 1
      %s172 = scalar_select %p171, %s18, 1
      %p173 = scmp.lt.s32.totalorder %s170, 35
      %s174 = scalar_select %p173, %s170, 35
      %s175 = smul.addr %s172, 36
      %s176 = sadd.s32 %s174, %s175
      %s177 = smul.addr %s176, 4
      %s178 = scalar_lea.vmem %s3, %s177
      %p179 = scmp.lt.s32.totalorder %s18, 1
      %s180 = scalar_select %p179, %s18, 1
      %s181 = smul.addr %s180, 41
      %s182 = smul.addr %s181, 8
      %s183 = scalar_lea.vmem %s0, %s182
      %s184 = smul.u32 18, %s19
      %p185 = scmp.lt.s32.totalorder %s18, 1
      %s186 = scalar_select %p185, %s18, 1
      %p187 = scmp.lt.s32.totalorder %s184, 35
      %s188 = scalar_select %p187, %s184, 35
      %s189 = smul.addr %s186, 36
      %s190 = sadd.s32 %s188, %s189
      %s191 = smul.addr %s190, 4
      %s192 = scalar_lea.vmem %s3, %s191
      %s193 = smul.u32 18, %s19
      %s195 = smul.u32 %s19, 144
      %s196 = scalar_lea.vmem %s183, %s195
      %v197 = vld [vmem:[%s196] sm:$0xff]
      %v198 = vld [vmem:[%s196 + $0x8] sm:$0xff]
      %v199 = vld [vmem:[%s196 + $0x10] sm:$0xff]
      %v200 = vld [vmem:[%s196 + $0x18] sm:$0xff]
      %v201 = vld [vmem:[%s196 + $0x20] sm:$0xff]
      %v202 = vld [vmem:[%s196 + $0x28] sm:$0xff]
      %v203 = vld [vmem:[%s196 + $0x30] sm:$0xff]
      %v204 = vld [vmem:[%s196 + $0x38] sm:$0xff]
      %v205 = vld [vmem:[%s196 + $0x40] sm:$0xff]
      %v206 = vld [vmem:[%s196 + $0x48] sm:$0xff]
      %v207 = vld [vmem:[%s196 + $0x50] sm:$0xff]
      %v208 = vld [vmem:[%s196 + $0x58] sm:$0xff]
      %v209 = vld [vmem:[%s196 + $0x60] sm:$0xff]
      %v210 = vld [vmem:[%s196 + $0x68] sm:$0xff]
      %v211 = vld [vmem:[%s196 + $0x70] sm:$0xff]
      %v212 = vld [vmem:[%s196 + $0x78] sm:$0xff]
      %v213 = vld [vmem:[%s196 + $0x80] sm:$0xff]
      %v214 = vld [vmem:[%s196 + $0x88] sm:$0xff]
      %s215 = sadd.s32 %s195, 1
      %s216 = scalar_lea.vmem %s183, %s215
      %v217 = vld [vmem:[%s216] sm:$0xff]
      %v218 = vld [vmem:[%s216 + $0x8] sm:$0xff]
      %v219 = vld [vmem:[%s216 + $0x10] sm:$0xff]
      %v220 = vld [vmem:[%s216 + $0x18] sm:$0xff]
      %v221 = vld [vmem:[%s216 + $0x20] sm:$0xff]
      %v222 = vld [vmem:[%s216 + $0x28] sm:$0xff]
      %v223 = vld [vmem:[%s216 + $0x30] sm:$0xff]
      %v224 = vld [vmem:[%s216 + $0x38] sm:$0xff]
      %v225 = vld [vmem:[%s216 + $0x40] sm:$0xff]
      %v226 = vld [vmem:[%s216 + $0x48] sm:$0xff]
      %v227 = vld [vmem:[%s216 + $0x50] sm:$0xff]
      %v228 = vld [vmem:[%s216 + $0x58] sm:$0xff]
      %v229 = vld [vmem:[%s216 + $0x60] sm:$0xff]
      %v230 = vld [vmem:[%s216 + $0x68] sm:$0xff]
      %v231 = vld [vmem:[%s216 + $0x70] sm:$0xff]
      %v232 = vld [vmem:[%s216 + $0x78] sm:$0xff]
      %v233 = vld [vmem:[%s216 + $0x80] sm:$0xff]
      %v234 = vld [vmem:[%s216 + $0x88] sm:$0xff]
      %s235 = sadd.s32 %s195, 2
      %s236 = scalar_lea.vmem %s183, %s235
      %v237 = vld [vmem:[%s236] sm:$0xff]
      %v238 = vld [vmem:[%s236 + $0x8] sm:$0xff]
      %v239 = vld [vmem:[%s236 + $0x10] sm:$0xff]
      %v240 = vld [vmem:[%s236 + $0x18] sm:$0xff]
      %v241 = vld [vmem:[%s236 + $0x20] sm:$0xff]
      %v242 = vld [vmem:[%s236 + $0x28] sm:$0xff]
      %v243 = vld [vmem:[%s236 + $0x30] sm:$0xff]
      %v244 = vld [vmem:[%s236 + $0x38] sm:$0xff]
      %v245 = vld [vmem:[%s236 + $0x40] sm:$0xff]
      %v246 = vld [vmem:[%s236 + $0x48] sm:$0xff]
      %v247 = vld [vmem:[%s236 + $0x50] sm:$0xff]
      %v248 = vld [vmem:[%s236 + $0x58] sm:$0xff]
      %v249 = vld [vmem:[%s236 + $0x60] sm:$0xff]
      %v250 = vld [vmem:[%s236 + $0x68] sm:$0xff]
      %v251 = vld [vmem:[%s236 + $0x70] sm:$0xff]
      %v252 = vld [vmem:[%s236 + $0x78] sm:$0xff]
      %v253 = vld [vmem:[%s236 + $0x80] sm:$0xff]
      %v254 = vld [vmem:[%s236 + $0x88] sm:$0xff]
      %s255 = sadd.s32 %s195, 18
      %s256 = scalar_lea.vmem %s183, %s255
      %v257 = vld [vmem:[%s256] sm:$0xff]
      %v258 = vld [vmem:[%s256 + $0x8] sm:$0xff]
      %v259 = vld [vmem:[%s256 + $0x10] sm:$0xff]
      %v260 = vld [vmem:[%s256 + $0x18] sm:$0xff]
      %v261 = vld [vmem:[%s256 + $0x20] sm:$0xff]
      %v262 = vld [vmem:[%s256 + $0x28] sm:$0xff]
      %v263 = vld [vmem:[%s256 + $0x30] sm:$0xff]
      %v264 = vld [vmem:[%s256 + $0x38] sm:$0xff]
      %v265 = vld [vmem:[%s256 + $0x40] sm:$0xff]
      %v266 = vld [vmem:[%s256 + $0x48] sm:$0xff]
      %v267 = vld [vmem:[%s256 + $0x50] sm:$0xff]
      %v268 = vld [vmem:[%s256 + $0x58] sm:$0xff]
      %v269 = vld [vmem:[%s256 + $0x60] sm:$0xff]
      %v270 = vld [vmem:[%s256 + $0x68] sm:$0xff]
      %v271 = vld [vmem:[%s256 + $0x70] sm:$0xff]
      %v272 = vld [vmem:[%s256 + $0x78] sm:$0xff]
      %v273 = vld [vmem:[%s256 + $0x80] sm:$0xff]
      %v274 = vld [vmem:[%s256 + $0x88] sm:$0xff]
      %s275 = sadd.s32 %s195, 19
      %s276 = scalar_lea.vmem %s183, %s275
      %v277 = vld [vmem:[%s276] sm:$0xff]
      %v278 = vld [vmem:[%s276 + $0x8] sm:$0xff]
      %v279 = vld [vmem:[%s276 + $0x10] sm:$0xff]
      %v280 = vld [vmem:[%s276 + $0x18] sm:$0xff]
      %v281 = vld [vmem:[%s276 + $0x20] sm:$0xff]
      %v282 = vld [vmem:[%s276 + $0x28] sm:$0xff]
      %v283 = vld [vmem:[%s276 + $0x30] sm:$0xff]
      %v284 = vld [vmem:[%s276 + $0x38] sm:$0xff]
      %v285 = vld [vmem:[%s276 + $0x40] sm:$0xff]
      %v286 = vld [vmem:[%s276 + $0x48] sm:$0xff]
      %v287 = vld [vmem:[%s276 + $0x50] sm:$0xff]
      %v288 = vld [vmem:[%s276 + $0x58] sm:$0xff]
      %v289 = vld [vmem:[%s276 + $0x60] sm:$0xff]
      %v290 = vld [vmem:[%s276 + $0x68] sm:$0xff]
      %v291 = vld [vmem:[%s276 + $0x70] sm:$0xff]
      %v292 = vld [vmem:[%s276 + $0x78] sm:$0xff]
      %v293 = vld [vmem:[%s276 + $0x80] sm:$0xff]
      %v294 = vld [vmem:[%s276 + $0x88] sm:$0xff]
      %s295 = sadd.s32 %s195, 20
      %s296 = scalar_lea.vmem %s183, %s295
      %v297 = vld [vmem:[%s296] sm:$0xff]
      %v298 = vld [vmem:[%s296 + $0x8] sm:$0xff]
      %v299 = vld [vmem:[%s296 + $0x10] sm:$0xff]
      %v300 = vld [vmem:[%s296 + $0x18] sm:$0xff]
      %v301 = vld [vmem:[%s296 + $0x20] sm:$0xff]
      %v302 = vld [vmem:[%s296 + $0x28] sm:$0xff]
      %v303 = vld [vmem:[%s296 + $0x30] sm:$0xff]
      %v304 = vld [vmem:[%s296 + $0x38] sm:$0xff]
      %v305 = vld [vmem:[%s296 + $0x40] sm:$0xff]
      %v306 = vld [vmem:[%s296 + $0x48] sm:$0xff]
      %v307 = vld [vmem:[%s296 + $0x50] sm:$0xff]
      %v308 = vld [vmem:[%s296 + $0x58] sm:$0xff]
      %v309 = vld [vmem:[%s296 + $0x60] sm:$0xff]
      %v310 = vld [vmem:[%s296 + $0x68] sm:$0xff]
      %v311 = vld [vmem:[%s296 + $0x70] sm:$0xff]
      %v312 = vld [vmem:[%s296 + $0x78] sm:$0xff]
      %v313 = vld [vmem:[%s296 + $0x80] sm:$0xff]
      %v314 = vld [vmem:[%s296 + $0x88] sm:$0xff]
      %s315 = sadd.s32 %s195, 36
      %s316 = scalar_lea.vmem %s183, %s315
      %v317 = vld [vmem:[%s316] sm:$0xff]
      %v318 = vld [vmem:[%s316 + $0x8] sm:$0xff]
      %v319 = vld [vmem:[%s316 + $0x10] sm:$0xff]
      %v320 = vld [vmem:[%s316 + $0x18] sm:$0xff]
      %v321 = vld [vmem:[%s316 + $0x20] sm:$0xff]
      %v322 = vld [vmem:[%s316 + $0x28] sm:$0xff]
      %v323 = vld [vmem:[%s316 + $0x30] sm:$0xff]
      %v324 = vld [vmem:[%s316 + $0x38] sm:$0xff]
      %v325 = vld [vmem:[%s316 + $0x40] sm:$0xff]
      %v326 = vld [vmem:[%s316 + $0x48] sm:$0xff]
      %v327 = vld [vmem:[%s316 + $0x50] sm:$0xff]
      %v328 = vld [vmem:[%s316 + $0x58] sm:$0xff]
      %v329 = vld [vmem:[%s316 + $0x60] sm:$0xff]
      %v330 = vld [vmem:[%s316 + $0x68] sm:$0xff]
      %v331 = vld [vmem:[%s316 + $0x70] sm:$0xff]
      %v332 = vld [vmem:[%s316 + $0x78] sm:$0xff]
      %v333 = vld [vmem:[%s316 + $0x80] sm:$0xff]
      %v334 = vld [vmem:[%s316 + $0x88] sm:$0xff]
      %s335 = sadd.s32 %s195, 37
      %s336 = scalar_lea.vmem %s183, %s335
      %v337 = vld [vmem:[%s336] sm:$0xff]
      %v338 = vld [vmem:[%s336 + $0x8] sm:$0xff]
      %v339 = vld [vmem:[%s336 + $0x10] sm:$0xff]
      %v340 = vld [vmem:[%s336 + $0x18] sm:$0xff]
      %v341 = vld [vmem:[%s336 + $0x20] sm:$0xff]
      %v342 = vld [vmem:[%s336 + $0x28] sm:$0xff]
      %v343 = vld [vmem:[%s336 + $0x30] sm:$0xff]
      %v344 = vld [vmem:[%s336 + $0x38] sm:$0xff]
      %v345 = vld [vmem:[%s336 + $0x40] sm:$0xff]
      %v346 = vld [vmem:[%s336 + $0x48] sm:$0xff]
      %v347 = vld [vmem:[%s336 + $0x50] sm:$0xff]
      %v348 = vld [vmem:[%s336 + $0x58] sm:$0xff]
      %v349 = vld [vmem:[%s336 + $0x60] sm:$0xff]
      %v350 = vld [vmem:[%s336 + $0x68] sm:$0xff]
      %v351 = vld [vmem:[%s336 + $0x70] sm:$0xff]
      %v352 = vld [vmem:[%s336 + $0x78] sm:$0xff]
      %v353 = vld [vmem:[%s336 + $0x80] sm:$0xff]
      %v354 = vld [vmem:[%s336 + $0x88] sm:$0xff]
      %s355 = sadd.s32 %s195, 38
      %s356 = scalar_lea.vmem %s183, %s355
      %v357 = vld [vmem:[%s356] sm:$0xff]
      %v358 = vld [vmem:[%s356 + $0x8] sm:$0xff]
      %v359 = vld [vmem:[%s356 + $0x10] sm:$0xff]
      %v360 = vld [vmem:[%s356 + $0x18] sm:$0xff]
      %v361 = vld [vmem:[%s356 + $0x20] sm:$0xff]
      %v362 = vld [vmem:[%s356 + $0x28] sm:$0xff]
      %v363 = vld [vmem:[%s356 + $0x30] sm:$0xff]
      %v364 = vld [vmem:[%s356 + $0x38] sm:$0xff]
      %v365 = vld [vmem:[%s356 + $0x40] sm:$0xff]
      %v366 = vld [vmem:[%s356 + $0x48] sm:$0xff]
      %v367 = vld [vmem:[%s356 + $0x50] sm:$0xff]
      %v368 = vld [vmem:[%s356 + $0x58] sm:$0xff]
      %v369 = vld [vmem:[%s356 + $0x60] sm:$0xff]
      %v370 = vld [vmem:[%s356 + $0x68] sm:$0xff]
      %v371 = vld [vmem:[%s356 + $0x70] sm:$0xff]
      %v372 = vld [vmem:[%s356 + $0x78] sm:$0xff]
      %v373 = vld [vmem:[%s356 + $0x80] sm:$0xff]
      %v374 = vld [vmem:[%s356 + $0x88] sm:$0xff]
      %393 = vrot.lane.b32.xlu0 %v217, 4
      %v394 = vpop.permute.xlu0 %393
      %395 = vrot.lane.b32.xlu0 %v218, 4
      %v396 = vpop.permute.xlu0 %395
      %397 = vrot.lane.b32.xlu0 %v219, 4
      %v398 = vpop.permute.xlu0 %397
      %399 = vrot.lane.b32.xlu0 %v220, 4
      %v400 = vpop.permute.xlu0 %399
      %401 = vrot.lane.b32.xlu0 %v221, 4
      %v402 = vpop.permute.xlu0 %401
      %403 = vrot.lane.b32.xlu0 %v222, 4
      %v404 = vpop.permute.xlu0 %403
      %405 = vrot.lane.b32.xlu0 %v223, 4
      %v406 = vpop.permute.xlu0 %405
      %407 = vrot.lane.b32.xlu0 %v224, 4
      %v408 = vpop.permute.xlu0 %407
      %409 = vrot.lane.b32.xlu0 %v225, 4
      %v410 = vpop.permute.xlu0 %409
      %411 = vrot.lane.b32.xlu0 %v226, 4
      %v412 = vpop.permute.xlu0 %411
      %413 = vrot.lane.b32.xlu0 %v227, 4
      %v414 = vpop.permute.xlu0 %413
      %415 = vrot.lane.b32.xlu0 %v228, 4
      %v416 = vpop.permute.xlu0 %415
      %417 = vrot.lane.b32.xlu0 %v229, 4
      %v418 = vpop.permute.xlu0 %417
      %419 = vrot.lane.b32.xlu0 %v230, 4
      %v420 = vpop.permute.xlu0 %419
      %421 = vrot.lane.b32.xlu0 %v231, 4
      %v422 = vpop.permute.xlu0 %421
      %423 = vrot.lane.b32.xlu0 %v232, 4
      %v424 = vpop.permute.xlu0 %423
      %425 = vrot.lane.b32.xlu0 %v233, 4
      %v426 = vpop.permute.xlu0 %425
      %427 = vrot.lane.b32.xlu0 %v234, 4
      %v428 = vpop.permute.xlu0 %427
      %465 = vrot.lane.b32.xlu0 %v237, 8
      %v466 = vpop.permute.xlu0 %465
      %467 = vrot.lane.b32.xlu0 %v238, 8
      %v468 = vpop.permute.xlu0 %467
      %469 = vrot.lane.b32.xlu0 %v239, 8
      %v470 = vpop.permute.xlu0 %469
      %471 = vrot.lane.b32.xlu0 %v240, 8
      %v472 = vpop.permute.xlu0 %471
      %473 = vrot.lane.b32.xlu0 %v241, 8
      %v474 = vpop.permute.xlu0 %473
      %475 = vrot.lane.b32.xlu0 %v242, 8
      %v476 = vpop.permute.xlu0 %475
      %477 = vrot.lane.b32.xlu0 %v243, 8
      %v478 = vpop.permute.xlu0 %477
      %479 = vrot.lane.b32.xlu0 %v244, 8
      %v480 = vpop.permute.xlu0 %479
      %481 = vrot.lane.b32.xlu0 %v245, 8
      %v482 = vpop.permute.xlu0 %481
      %483 = vrot.lane.b32.xlu0 %v246, 8
      %v484 = vpop.permute.xlu0 %483
      %485 = vrot.lane.b32.xlu0 %v247, 8
      %v486 = vpop.permute.xlu0 %485
      %487 = vrot.lane.b32.xlu0 %v248, 8
      %v488 = vpop.permute.xlu0 %487
      %489 = vrot.lane.b32.xlu0 %v249, 8
      %v490 = vpop.permute.xlu0 %489
      %491 = vrot.lane.b32.xlu0 %v250, 8
      %v492 = vpop.permute.xlu0 %491
      %493 = vrot.lane.b32.xlu0 %v251, 8
      %v494 = vpop.permute.xlu0 %493
      %495 = vrot.lane.b32.xlu0 %v252, 8
      %v496 = vpop.permute.xlu0 %495
      %497 = vrot.lane.b32.xlu0 %v253, 8
      %v498 = vpop.permute.xlu0 %497
      %499 = vrot.lane.b32.xlu0 %v254, 8
      %v500 = vpop.permute.xlu0 %499
      %537 = vrot.lane.b32.xlu0 %v257, 12
      %v538 = vpop.permute.xlu0 %537
      %539 = vrot.lane.b32.xlu0 %v258, 12
      %v540 = vpop.permute.xlu0 %539
      %541 = vrot.lane.b32.xlu0 %v259, 12
      %v542 = vpop.permute.xlu0 %541
      %543 = vrot.lane.b32.xlu0 %v260, 12
      %v544 = vpop.permute.xlu0 %543
      %545 = vrot.lane.b32.xlu0 %v261, 12
      %v546 = vpop.permute.xlu0 %545
      %547 = vrot.lane.b32.xlu0 %v262, 12
      %v548 = vpop.permute.xlu0 %547
      %549 = vrot.lane.b32.xlu0 %v263, 12
      %v550 = vpop.permute.xlu0 %549
      %551 = vrot.lane.b32.xlu0 %v264, 12
      %v552 = vpop.permute.xlu0 %551
      %553 = vrot.lane.b32.xlu0 %v265, 12
      %v554 = vpop.permute.xlu0 %553
      %555 = vrot.lane.b32.xlu0 %v266, 12
      %v556 = vpop.permute.xlu0 %555
      %557 = vrot.lane.b32.xlu0 %v267, 12
      %v558 = vpop.permute.xlu0 %557
      %559 = vrot.lane.b32.xlu0 %v268, 12
      %v560 = vpop.permute.xlu0 %559
      %561 = vrot.lane.b32.xlu0 %v269, 12
      %v562 = vpop.permute.xlu0 %561
      %563 = vrot.lane.b32.xlu0 %v270, 12
      %v564 = vpop.permute.xlu0 %563
      %565 = vrot.lane.b32.xlu0 %v271, 12
      %v566 = vpop.permute.xlu0 %565
      %567 = vrot.lane.b32.xlu0 %v272, 12
      %v568 = vpop.permute.xlu0 %567
      %569 = vrot.lane.b32.xlu0 %v273, 12
      %v570 = vpop.permute.xlu0 %569
      %571 = vrot.lane.b32.xlu0 %v274, 12
      %v572 = vpop.permute.xlu0 %571
      %609 = vrot.lane.b32.xlu0 %v277, 16
      %v610 = vpop.permute.xlu0 %609
      %611 = vrot.lane.b32.xlu0 %v278, 16
      %v612 = vpop.permute.xlu0 %611
      %613 = vrot.lane.b32.xlu0 %v279, 16
      %v614 = vpop.permute.xlu0 %613
      %615 = vrot.lane.b32.xlu0 %v280, 16
      %v616 = vpop.permute.xlu0 %615
      %617 = vrot.lane.b32.xlu0 %v281, 16
      %v618 = vpop.permute.xlu0 %617
      %619 = vrot.lane.b32.xlu0 %v282, 16
      %v620 = vpop.permute.xlu0 %619
      %621 = vrot.lane.b32.xlu0 %v283, 16
      %v622 = vpop.permute.xlu0 %621
      %623 = vrot.lane.b32.xlu0 %v284, 16
      %v624 = vpop.permute.xlu0 %623
      %625 = vrot.lane.b32.xlu0 %v285, 16
      %v626 = vpop.permute.xlu0 %625
      %627 = vrot.lane.b32.xlu0 %v286, 16
      %v628 = vpop.permute.xlu0 %627
      %629 = vrot.lane.b32.xlu0 %v287, 16
      %v630 = vpop.permute.xlu0 %629
      %631 = vrot.lane.b32.xlu0 %v288, 16
      %v632 = vpop.permute.xlu0 %631
      %633 = vrot.lane.b32.xlu0 %v289, 16
      %v634 = vpop.permute.xlu0 %633
      %635 = vrot.lane.b32.xlu0 %v290, 16
      %v636 = vpop.permute.xlu0 %635
      %637 = vrot.lane.b32.xlu0 %v291, 16
      %v638 = vpop.permute.xlu0 %637
      %639 = vrot.lane.b32.xlu0 %v292, 16
      %v640 = vpop.permute.xlu0 %639
      %641 = vrot.lane.b32.xlu0 %v293, 16
      %v642 = vpop.permute.xlu0 %641
      %643 = vrot.lane.b32.xlu0 %v294, 16
      %v644 = vpop.permute.xlu0 %643
      %681 = vrot.lane.b32.xlu0 %v297, 20
      %v682 = vpop.permute.xlu0 %681
      %683 = vrot.lane.b32.xlu0 %v298, 20
      %v684 = vpop.permute.xlu0 %683
      %685 = vrot.lane.b32.xlu0 %v299, 20
      %v686 = vpop.permute.xlu0 %685
      %687 = vrot.lane.b32.xlu0 %v300, 20
      %v688 = vpop.permute.xlu0 %687
      %689 = vrot.lane.b32.xlu0 %v301, 20
      %v690 = vpop.permute.xlu0 %689
      %691 = vrot.lane.b32.xlu0 %v302, 20
      %v692 = vpop.permute.xlu0 %691
      %693 = vrot.lane.b32.xlu0 %v303, 20
      %v694 = vpop.permute.xlu0 %693
      %695 = vrot.lane.b32.xlu0 %v304, 20
      %v696 = vpop.permute.xlu0 %695
      %697 = vrot.lane.b32.xlu0 %v305, 20
      %v698 = vpop.permute.xlu0 %697
      %699 = vrot.lane.b32.xlu0 %v306, 20
      %v700 = vpop.permute.xlu0 %699
      %701 = vrot.lane.b32.xlu0 %v307, 20
      %v702 = vpop.permute.xlu0 %701
      %703 = vrot.lane.b32.xlu0 %v308, 20
      %v704 = vpop.permute.xlu0 %703
      %705 = vrot.lane.b32.xlu0 %v309, 20
      %v706 = vpop.permute.xlu0 %705
      %707 = vrot.lane.b32.xlu0 %v310, 20
      %v708 = vpop.permute.xlu0 %707
      %709 = vrot.lane.b32.xlu0 %v311, 20
      %v710 = vpop.permute.xlu0 %709
      %711 = vrot.lane.b32.xlu0 %v312, 20
      %v712 = vpop.permute.xlu0 %711
      %713 = vrot.lane.b32.xlu0 %v313, 20
      %v714 = vpop.permute.xlu0 %713
      %715 = vrot.lane.b32.xlu0 %v314, 20
      %v716 = vpop.permute.xlu0 %715
      %753 = vrot.lane.b32.xlu0 %v317, 24
      %v754 = vpop.permute.xlu0 %753
      %755 = vrot.lane.b32.xlu0 %v318, 24
      %v756 = vpop.permute.xlu0 %755
      %757 = vrot.lane.b32.xlu0 %v319, 24
      %v758 = vpop.permute.xlu0 %757
      %759 = vrot.lane.b32.xlu0 %v320, 24
      %v760 = vpop.permute.xlu0 %759
      %761 = vrot.lane.b32.xlu0 %v321, 24
      %v762 = vpop.permute.xlu0 %761
      %763 = vrot.lane.b32.xlu0 %v322, 24
      %v764 = vpop.permute.xlu0 %763
      %765 = vrot.lane.b32.xlu0 %v323, 24
      %v766 = vpop.permute.xlu0 %765
      %767 = vrot.lane.b32.xlu0 %v324, 24
      %v768 = vpop.permute.xlu0 %767
      %769 = vrot.lane.b32.xlu0 %v325, 24
      %v770 = vpop.permute.xlu0 %769
      %771 = vrot.lane.b32.xlu0 %v326, 24
      %v772 = vpop.permute.xlu0 %771
      %773 = vrot.lane.b32.xlu0 %v327, 24
      %v774 = vpop.permute.xlu0 %773
      %775 = vrot.lane.b32.xlu0 %v328, 24
      %v776 = vpop.permute.xlu0 %775
      %777 = vrot.lane.b32.xlu0 %v329, 24
      %v778 = vpop.permute.xlu0 %777
      %779 = vrot.lane.b32.xlu0 %v330, 24
      %v780 = vpop.permute.xlu0 %779
      %781 = vrot.lane.b32.xlu0 %v331, 24
      %v782 = vpop.permute.xlu0 %781
      %783 = vrot.lane.b32.xlu0 %v332, 24
      %v784 = vpop.permute.xlu0 %783
      %785 = vrot.lane.b32.xlu0 %v333, 24
      %v786 = vpop.permute.xlu0 %785
      %787 = vrot.lane.b32.xlu0 %v334, 24
      %v788 = vpop.permute.xlu0 %787
      %825 = vrot.lane.b32.xlu0 %v337, 28
      %v826 = vpop.permute.xlu0 %825
      %827 = vrot.lane.b32.xlu0 %v338, 28
      %v828 = vpop.permute.xlu0 %827
      %829 = vrot.lane.b32.xlu0 %v339, 28
      %v830 = vpop.permute.xlu0 %829
      %831 = vrot.lane.b32.xlu0 %v340, 28
      %v832 = vpop.permute.xlu0 %831
      %833 = vrot.lane.b32.xlu0 %v341, 28
      %v834 = vpop.permute.xlu0 %833
      %835 = vrot.lane.b32.xlu0 %v342, 28
      %v836 = vpop.permute.xlu0 %835
      %837 = vrot.lane.b32.xlu0 %v343, 28
      %v838 = vpop.permute.xlu0 %837
      %839 = vrot.lane.b32.xlu0 %v344, 28
      %v840 = vpop.permute.xlu0 %839
      %841 = vrot.lane.b32.xlu0 %v345, 28
      %v842 = vpop.permute.xlu0 %841
      %843 = vrot.lane.b32.xlu0 %v346, 28
      %v844 = vpop.permute.xlu0 %843
      %845 = vrot.lane.b32.xlu0 %v347, 28
      %v846 = vpop.permute.xlu0 %845
      %847 = vrot.lane.b32.xlu0 %v348, 28
      %v848 = vpop.permute.xlu0 %847
      %849 = vrot.lane.b32.xlu0 %v349, 28
      %v850 = vpop.permute.xlu0 %849
      %851 = vrot.lane.b32.xlu0 %v350, 28
      %v852 = vpop.permute.xlu0 %851
      %853 = vrot.lane.b32.xlu0 %v351, 28
      %v854 = vpop.permute.xlu0 %853
      %855 = vrot.lane.b32.xlu0 %v352, 28
      %v856 = vpop.permute.xlu0 %855
      %857 = vrot.lane.b32.xlu0 %v353, 28
      %v858 = vpop.permute.xlu0 %857
      %859 = vrot.lane.b32.xlu0 %v354, 28
      %v860 = vpop.permute.xlu0 %859
      %897 = vrot.lane.b32.xlu0 %v357, 32
      %v898 = vpop.permute.xlu0 %897
      %899 = vrot.lane.b32.xlu0 %v358, 32
      %v900 = vpop.permute.xlu0 %899
      %901 = vrot.lane.b32.xlu0 %v359, 32
      %v902 = vpop.permute.xlu0 %901
      %903 = vrot.lane.b32.xlu0 %v360, 32
      %v904 = vpop.permute.xlu0 %903
      %905 = vrot.lane.b32.xlu0 %v361, 32
      %v906 = vpop.permute.xlu0 %905
      %907 = vrot.lane.b32.xlu0 %v362, 32
      %v908 = vpop.permute.xlu0 %907
      %909 = vrot.lane.b32.xlu0 %v363, 32
      %v910 = vpop.permute.xlu0 %909
      %911 = vrot.lane.b32.xlu0 %v364, 32
      %v912 = vpop.permute.xlu0 %911
      %913 = vrot.lane.b32.xlu0 %v365, 32
      %v914 = vpop.permute.xlu0 %913
      %915 = vrot.lane.b32.xlu0 %v366, 32
      %v916 = vpop.permute.xlu0 %915
      %917 = vrot.lane.b32.xlu0 %v367, 32
      %v918 = vpop.permute.xlu0 %917
      %919 = vrot.lane.b32.xlu0 %v368, 32
      %v920 = vpop.permute.xlu0 %919
      %921 = vrot.lane.b32.xlu0 %v369, 32
      %v922 = vpop.permute.xlu0 %921
      %923 = vrot.lane.b32.xlu0 %v370, 32
      %v924 = vpop.permute.xlu0 %923
      %925 = vrot.lane.b32.xlu0 %v371, 32
      %v926 = vpop.permute.xlu0 %925
      %927 = vrot.lane.b32.xlu0 %v372, 32
      %v928 = vpop.permute.xlu0 %927
      %929 = vrot.lane.b32.xlu0 %v373, 32
      %v930 = vpop.permute.xlu0 %929
      %931 = vrot.lane.b32.xlu0 %v374, 32
      %v932 = vpop.permute.xlu0 %931
      %vm951 = vcmask 31744
      %v952 = vsel %vm951, %v197, %v394
      %v953 = vsel %vm951, %v198, %v396
      %v954 = vsel %vm951, %v199, %v398
      %v955 = vsel %vm951, %v200, %v400
      %v956 = vsel %vm951, %v201, %v402
      %v957 = vsel %vm951, %v202, %v404
      %v958 = vsel %vm951, %v203, %v406
      %v959 = vsel %vm951, %v204, %v408
      %v960 = vsel %vm951, %v205, %v410
      %v961 = vsel %vm951, %v206, %v412
      %v962 = vsel %vm951, %v207, %v414
      %v963 = vsel %vm951, %v208, %v416
      %v964 = vsel %vm951, %v209, %v418
      %v965 = vsel %vm951, %v210, %v420
      %v966 = vsel %vm951, %v211, %v422
      %v967 = vsel %vm951, %v212, %v424
      %v968 = vsel %vm951, %v213, %v426
      %v969 = vsel %vm951, %v214, %v428
      %vm970 = vcmask 64512
      %v971 = vsel %vm970, %v952, %v466
      %v972 = vsel %vm970, %v953, %v468
      %v973 = vsel %vm970, %v954, %v470
      %v974 = vsel %vm970, %v955, %v472
      %v975 = vsel %vm970, %v956, %v474
      %v976 = vsel %vm970, %v957, %v476
      %v977 = vsel %vm970, %v958, %v478
      %v978 = vsel %vm970, %v959, %v480
      %v979 = vsel %vm970, %v960, %v482
      %v980 = vsel %vm970, %v961, %v484
      %v981 = vsel %vm970, %v962, %v486
      %v982 = vsel %vm970, %v963, %v488
      %v983 = vsel %vm970, %v964, %v490
      %v984 = vsel %vm970, %v965, %v492
      %v985 = vsel %vm970, %v966, %v494
      %v986 = vsel %vm970, %v967, %v496
      %v987 = vsel %vm970, %v968, %v498
      %v988 = vsel %vm970, %v969, %v500
      %vm989 = vcmask 97280
      %v990 = vsel %vm989, %v971, %v538
      %v991 = vsel %vm989, %v972, %v540
      %v992 = vsel %vm989, %v973, %v542
      %v993 = vsel %vm989, %v974, %v544
      %v994 = vsel %vm989, %v975, %v546
      %v995 = vsel %vm989, %v976, %v548
      %v996 = vsel %vm989, %v977, %v550
      %v997 = vsel %vm989, %v978, %v552
      %v998 = vsel %vm989, %v979, %v554
      %v999 = vsel %vm989, %v980, %v556
      %v1000 = vsel %vm989, %v981, %v558
      %v1001 = vsel %vm989, %v982, %v560
      %v1002 = vsel %vm989, %v983, %v562
      %v1003 = vsel %vm989, %v984, %v564
      %v1004 = vsel %vm989, %v985, %v566
      %v1005 = vsel %vm989, %v986, %v568
      %v1006 = vsel %vm989, %v987, %v570
      %v1007 = vsel %vm989, %v988, %v572
      %vm1008 = vcmask 130048
      %v1009 = vsel %vm1008, %v990, %v610
      %v1010 = vsel %vm1008, %v991, %v612
      %v1011 = vsel %vm1008, %v992, %v614
      %v1012 = vsel %vm1008, %v993, %v616
      %v1013 = vsel %vm1008, %v994, %v618
      %v1014 = vsel %vm1008, %v995, %v620
      %v1015 = vsel %vm1008, %v996, %v622
      %v1016 = vsel %vm1008, %v997, %v624
      %v1017 = vsel %vm1008, %v998, %v626
      %v1018 = vsel %vm1008, %v999, %v628
      %v1019 = vsel %vm1008, %v1000, %v630
      %v1020 = vsel %vm1008, %v1001, %v632
      %v1021 = vsel %vm1008, %v1002, %v634
      %v1022 = vsel %vm1008, %v1003, %v636
      %v1023 = vsel %vm1008, %v1004, %v638
      %v1024 = vsel %vm1008, %v1005, %v640
      %v1025 = vsel %vm1008, %v1006, %v642
      %v1026 = vsel %vm1008, %v1007, %v644
      %vm1027 = vcmask 162816
      %v1028 = vsel %vm1027, %v1009, %v682
      %v1029 = vsel %vm1027, %v1010, %v684
      %v1030 = vsel %vm1027, %v1011, %v686
      %v1031 = vsel %vm1027, %v1012, %v688
      %v1032 = vsel %vm1027, %v1013, %v690
      %v1033 = vsel %vm1027, %v1014, %v692
      %v1034 = vsel %vm1027, %v1015, %v694
      %v1035 = vsel %vm1027, %v1016, %v696
      %v1036 = vsel %vm1027, %v1017, %v698
      %v1037 = vsel %vm1027, %v1018, %v700
      %v1038 = vsel %vm1027, %v1019, %v702
      %v1039 = vsel %vm1027, %v1020, %v704
      %v1040 = vsel %vm1027, %v1021, %v706
      %v1041 = vsel %vm1027, %v1022, %v708
      %v1042 = vsel %vm1027, %v1023, %v710
      %v1043 = vsel %vm1027, %v1024, %v712
      %v1044 = vsel %vm1027, %v1025, %v714
      %v1045 = vsel %vm1027, %v1026, %v716
      %vm1046 = vcmask 195584
      %v1047 = vsel %vm1046, %v1028, %v754
      %v1048 = vsel %vm1046, %v1029, %v756
      %v1049 = vsel %vm1046, %v1030, %v758
      %v1050 = vsel %vm1046, %v1031, %v760
      %v1051 = vsel %vm1046, %v1032, %v762
      %v1052 = vsel %vm1046, %v1033, %v764
      %v1053 = vsel %vm1046, %v1034, %v766
      %v1054 = vsel %vm1046, %v1035, %v768
      %v1055 = vsel %vm1046, %v1036, %v770
      %v1056 = vsel %vm1046, %v1037, %v772
      %v1057 = vsel %vm1046, %v1038, %v774
      %v1058 = vsel %vm1046, %v1039, %v776
      %v1059 = vsel %vm1046, %v1040, %v778
      %v1060 = vsel %vm1046, %v1041, %v780
      %v1061 = vsel %vm1046, %v1042, %v782
      %v1062 = vsel %vm1046, %v1043, %v784
      %v1063 = vsel %vm1046, %v1044, %v786
      %v1064 = vsel %vm1046, %v1045, %v788
      %vm1065 = vcmask 228352
      %v1066 = vsel %vm1065, %v1047, %v826
      %v1067 = vsel %vm1065, %v1048, %v828
      %v1068 = vsel %vm1065, %v1049, %v830
      %v1069 = vsel %vm1065, %v1050, %v832
      %v1070 = vsel %vm1065, %v1051, %v834
      %v1071 = vsel %vm1065, %v1052, %v836
      %v1072 = vsel %vm1065, %v1053, %v838
      %v1073 = vsel %vm1065, %v1054, %v840
      %v1074 = vsel %vm1065, %v1055, %v842
      %v1075 = vsel %vm1065, %v1056, %v844
      %v1076 = vsel %vm1065, %v1057, %v846
      %v1077 = vsel %vm1065, %v1058, %v848
      %v1078 = vsel %vm1065, %v1059, %v850
      %v1079 = vsel %vm1065, %v1060, %v852
      %v1080 = vsel %vm1065, %v1061, %v854
      %v1081 = vsel %vm1065, %v1062, %v856
      %v1082 = vsel %vm1065, %v1063, %v858
      %v1083 = vsel %vm1065, %v1064, %v860
      %vm1084 = vcmask 261120
      %v1085 = vsel %vm1084, %v1066, %v898
      %v1086 = vsel %vm1084, %v1067, %v900
      %v1087 = vsel %vm1084, %v1068, %v902
      %v1088 = vsel %vm1084, %v1069, %v904
      %v1089 = vsel %vm1084, %v1070, %v906
      %v1090 = vsel %vm1084, %v1071, %v908
      %v1091 = vsel %vm1084, %v1072, %v910
      %v1092 = vsel %vm1084, %v1073, %v912
      %v1093 = vsel %vm1084, %v1074, %v914
      %v1094 = vsel %vm1084, %v1075, %v916
      %v1095 = vsel %vm1084, %v1076, %v918
      %v1096 = vsel %vm1084, %v1077, %v920
      %v1097 = vsel %vm1084, %v1078, %v922
      %v1098 = vsel %vm1084, %v1079, %v924
      %v1099 = vsel %vm1084, %v1080, %v926
      %v1100 = vsel %vm1084, %v1081, %v928
      %v1101 = vsel %vm1084, %v1082, %v930
      %v1102 = vsel %vm1084, %v1083, %v932
      %v1103 = vpack.c.bf16 %v1086, %v1085
      %v1104 = vpack.c.bf16 %v1088, %v1087
      %v1105 = vpack.c.bf16 %v1090, %v1089
      %v1106 = vpack.c.bf16 %v1092, %v1091
      %v1107 = vpack.c.bf16 %v1094, %v1093
      %v1108 = vpack.c.bf16 %v1096, %v1095
      %v1109 = vpack.c.bf16 %v1098, %v1097
      %v1110 = vpack.c.bf16 %v1100, %v1099
      %v1111 = vpack.c.bf16 %v1102, %v1101
      %v1112 = vld [vmem:[%s1] sm:$0xf]
      %v1113 = vld [vmem:[%s1 + $0x4] sm:$0xf]
      %v1114 = vld [vmem:[%s1 + $0x8] sm:$0xf]
      %v1115 = vld [vmem:[%s1 + $0xc] sm:$0xf]
      %v1116 = vld [vmem:[%s1 + $0x10] sm:$0x3]
      %v1117 = vld [vmem:[%s2] sm:$0x1]
      %v1119 = vlaneseq
      %v1120 = vshrl.u32 %v1119, 7
      %v1121 = vsub.s32 0, %v1120
      %v1122 = vrot.slane %v1117, %v1121
      %v1129 = vunpack.c.l.b16 %v1112
      %v1130 = vunpack.c.l.b16 %v1113
      %v1131 = vunpack.c.l.b16 %v1114
      %v1132 = vunpack.c.l.b16 %v1115
      %v1133 = vunpack.c.l.b16 %v1116
      %v1134 = vpack.c.b16 %v1130, %v1129
      %v1135 = vpack.c.b16 %v1132, %v1131
      %v1136 = vpack.c.b16 %v1133, %v1133
      %vm1139 = vcmask 293888
      %v1141 = vsel %vm1139, %v1103, 0
      %v1144 = vsel %vm1139, %v1104, 0
      %v1147 = vsel %vm1139, %v1105, 0
      %v1150 = vsel %vm1139, %v1106, 0
      %v1153 = vsel %vm1139, %v1107, 0
      %v1156 = vsel %vm1139, %v1108, 0
      %v1159 = vsel %vm1139, %v1109, 0
      %v1162 = vsel %vm1139, %v1110, 0
      %v1165 = vsel %vm1139, %v1111, 0
      %vm1167 = vcmask 1041408
      %v1169 = vsel %vm1167, %v1136, 0
      %1171 = vmatprep.subr.bf16.mxu0 0
      %1172 = vmatpush1.bf16.msra.mxu0 %v1134
      %1173 = vmatprep.subr.bf16.mxu0 0
      %1174 = vmatpush1.bf16.msra.mxu0 %v1135
      %1175 = vmatprep.subr.bf16.mxu0 0
      %1176 = vmatpush1.bf16.msra.mxu0 %v1169
      %1177 = vmatprep.subr.bf16.mxu0 0
      %1178 = vmatpush1.bf16.msra.mxu0 0
      %1179 = vmatprep.subr.bf16.mxu0 0
      %1180 = vmatpush1.bf16.msra.mxu0 0
      %1181 = vmatprep.subr.bf16.mxu0 0
      %1182 = vmatpush1.bf16.msra.mxu0 0
      %1183 = vmatprep.subr.bf16.mxu0 0
      %1184 = vmatpush1.bf16.msra.mxu0 0
      %1185 = vmatprep.subr.bf16.mxu0 0
      %1186 = vmatpush1.bf16.msra.mxu0 0
      %1187 = vmatprep.subr.bf16.mxu0 0
      %1188 = vmatpush1.bf16.msra.mxu0 0
      %1189 = vmatprep.subr.bf16.mxu0 0
      %1190 = vmatpush1.bf16.msra.mxu0 0
      %1191 = vmatprep.subr.bf16.mxu0 0
      %1192 = vmatpush1.bf16.msra.mxu0 0
      %1193 = vmatprep.subr.bf16.mxu0 0
      %1194 = vmatpush1.bf16.msra.mxu0 0
      %1195 = vmatprep.subr.bf16.mxu0 0
      %1196 = vmatpush1.bf16.msra.mxu0 0
      %1197 = vmatprep.subr.bf16.mxu0 0
      %1198 = vmatpush1.bf16.msra.mxu0 0
      %1199 = vmatprep.subr.bf16.mxu0 0
      %1200 = vmatpush1.bf16.msra.mxu0 0
      %1201 = vmatprep.subr.bf16.mxu0 0
      %1202 = vmatpush1.bf16.msra.mxu0 0
      %1203 = vmatprep.mubr.bf16.mxu0 0
      %1204 = vmatmul.mubr.bf16.gmra.mrb[0].mxu0 %v1141
      %v1205 = vpop.f32.mrb[0].mxu0
      %v1206 = vadd.f32 %v1122, %v1205
      %v1207 = vpop.f32.mrb[0].mxu0
      %v1208 = vpop.f32.mrb[0].mxu0
      %v1209 = vadd.f32 %v1122, %v1208
      %v1210 = vpop.f32.mrb[0].mxu0
      %1211 = vmatprep.mubr.bf16.mxu0 0
      %1212 = vmatmul.mubr.bf16.gmra.mrb[0].mxu0 %v1144
      %v1213 = vpop.f32.mrb[0].mxu0
      %v1214 = vadd.f32 %v1122, %v1213
      %v1215 = vpop.f32.mrb[0].mxu0
      %v1216 = vpop.f32.mrb[0].mxu0
      %v1217 = vadd.f32 %v1122, %v1216
      %v1218 = vpop.f32.mrb[0].mxu0
      %1219 = vmatprep.mubr.bf16.mxu0 0
      %1220 = vmatmul.mubr.bf16.gmra.mrb[0].mxu0 %v1147
      %v1221 = vpop.f32.mrb[0].mxu0
      %v1222 = vadd.f32 %v1122, %v1221
      %v1223 = vpop.f32.mrb[0].mxu0
      %v1224 = vpop.f32.mrb[0].mxu0
      %v1225 = vadd.f32 %v1122, %v1224
      %v1226 = vpop.f32.mrb[0].mxu0
      %1227 = vmatprep.mubr.bf16.mxu0 0
      %1228 = vmatmul.mubr.bf16.gmra.mrb[0].mxu0 %v1150
      %v1229 = vpop.f32.mrb[0].mxu0
      %v1230 = vadd.f32 %v1122, %v1229
      %v1231 = vpop.f32.mrb[0].mxu0
      %v1232 = vpop.f32.mrb[0].mxu0
      %v1233 = vadd.f32 %v1122, %v1232
      %v1234 = vpop.f32.mrb[0].mxu0
      %1235 = vmatprep.mubr.bf16.mxu0 0
      %1236 = vmatmul.mubr.bf16.gmra.mrb[0].mxu0 %v1153
      %v1237 = vpop.f32.mrb[0].mxu0
      %v1238 = vadd.f32 %v1122, %v1237
      %v1239 = vpop.f32.mrb[0].mxu0
      %v1240 = vpop.f32.mrb[0].mxu0
      %v1241 = vadd.f32 %v1122, %v1240
      %v1242 = vpop.f32.mrb[0].mxu0
      %1243 = vmatprep.mubr.bf16.mxu0 0
      %1244 = vmatmul.mubr.bf16.gmra.mrb[0].mxu0 %v1156
      %v1245 = vpop.f32.mrb[0].mxu0
      %v1246 = vadd.f32 %v1122, %v1245
      %v1247 = vpop.f32.mrb[0].mxu0
      %v1248 = vpop.f32.mrb[0].mxu0
      %v1249 = vadd.f32 %v1122, %v1248
      %v1250 = vpop.f32.mrb[0].mxu0
      %1251 = vmatprep.mubr.bf16.mxu0 0
      %1252 = vmatmul.mubr.bf16.gmra.mrb[0].mxu0 %v1159
      %v1253 = vpop.f32.mrb[0].mxu0
      %v1254 = vadd.f32 %v1122, %v1253
      %v1255 = vpop.f32.mrb[0].mxu0
      %v1256 = vpop.f32.mrb[0].mxu0
      %v1257 = vadd.f32 %v1122, %v1256
      %v1258 = vpop.f32.mrb[0].mxu0
      %1259 = vmatprep.mubr.bf16.mxu0 0
      %1260 = vmatmul.mubr.bf16.gmra.mrb[0].mxu0 %v1162
      %v1261 = vpop.f32.mrb[0].mxu0
      %v1262 = vadd.f32 %v1122, %v1261
      %v1263 = vpop.f32.mrb[0].mxu0
      %v1264 = vpop.f32.mrb[0].mxu0
      %v1265 = vadd.f32 %v1122, %v1264
      %v1266 = vpop.f32.mrb[0].mxu0
      %1267 = vmatprep.mubr.bf16.mxu0 0
      %1268 = vmatmul.mubr.bf16.gmra.mrb[0].mxu0 %v1165
      %v1269 = vpop.f32.mrb[0].mxu0
      %v1270 = vadd.f32 %v1122, %v1269
      %v1271 = vpop.f32.mrb[0].mxu0
      %v1272 = vpop.f32.mrb[0].mxu0
      %v1273 = vadd.f32 %v1122, %v1272
      %v1274 = vpop.f32.mrb[0].mxu0
      %1275 = vdwg.mxu0
      %v1276 = vmax.f32 %v1206, 0.0
      %v1277 = vmax.f32 %v1209, 0.0
      %v1278 = vmax.f32 %v1214, 0.0
      %v1279 = vmax.f32 %v1217, 0.0
      %v1280 = vmax.f32 %v1222, 0.0
      %v1281 = vmax.f32 %v1225, 0.0
      %v1282 = vmax.f32 %v1230, 0.0
      %v1283 = vmax.f32 %v1233, 0.0
      %v1284 = vmax.f32 %v1238, 0.0
      %v1285 = vmax.f32 %v1241, 0.0
      %v1286 = vmax.f32 %v1246, 0.0
      %v1287 = vmax.f32 %v1249, 0.0
      %v1288 = vmax.f32 %v1254, 0.0
      %v1289 = vmax.f32 %v1257, 0.0
      %v1290 = vmax.f32 %v1262, 0.0
      %v1291 = vmax.f32 %v1265, 0.0
      %v1292 = vmax.f32 %v1270, 0.0
      %v1293 = vmax.f32 %v1273, 0.0
      %v1294 = vpack.c.bf16 %v1277, %v1276
      %v1295 = vpack.c.bf16 %v1279, %v1278
      %v1296 = vpack.c.bf16 %v1281, %v1280
      %v1297 = vpack.c.bf16 %v1283, %v1282
      %v1298 = vpack.c.bf16 %v1285, %v1284
      %v1299 = vpack.c.bf16 %v1287, %v1286
      %v1300 = vpack.c.bf16 %v1289, %v1288
      %v1301 = vpack.c.bf16 %v1291, %v1290
      %v1302 = vpack.c.bf16 %v1293, %v1292
      %v1312 = vunpack.c.l.b16 %v1294
      %v1313 = vunpack.c.h.b16 %v1294
      %v1314 = vunpack.c.l.b16 %v1295
      %v1315 = vunpack.c.h.b16 %v1295
      %v1316 = vunpack.c.l.b16 %v1296
      %v1317 = vunpack.c.h.b16 %v1296
      %v1318 = vunpack.c.l.b16 %v1297
      %v1319 = vunpack.c.h.b16 %v1297
      %v1320 = vunpack.c.l.b16 %v1298
      %v1321 = vunpack.c.h.b16 %v1298
      %v1322 = vunpack.c.l.b16 %v1299
      %v1323 = vunpack.c.h.b16 %v1299
      %v1324 = vunpack.c.l.b16 %v1300
      %v1325 = vunpack.c.h.b16 %v1300
      %v1326 = vunpack.c.l.b16 %v1301
      %v1327 = vunpack.c.h.b16 %v1301
      %v1328 = vunpack.c.l.b16 %v1302
      %v1329 = vunpack.c.h.b16 %v1302
      %v1330 = vpack.c.b16 %v1312, %v1312
      %v1331 = vpack.c.b16 %v1313, %v1313
      %v1332 = vpack.c.b16 %v1314, %v1314
      %v1333 = vpack.c.b16 %v1315, %v1315
      %v1334 = vpack.c.b16 %v1316, %v1316
      %v1335 = vpack.c.b16 %v1317, %v1317
      %v1336 = vpack.c.b16 %v1318, %v1318
      %v1337 = vpack.c.b16 %v1319, %v1319
      %v1338 = vpack.c.b16 %v1320, %v1320
      %v1339 = vpack.c.b16 %v1321, %v1321
      %v1340 = vpack.c.b16 %v1322, %v1322
      %v1341 = vpack.c.b16 %v1323, %v1323
      %v1342 = vpack.c.b16 %v1324, %v1324
      %v1343 = vpack.c.b16 %v1325, %v1325
      %v1344 = vpack.c.b16 %v1326, %v1326
      %v1345 = vpack.c.b16 %v1327, %v1327
      %v1346 = vpack.c.b16 %v1328, %v1328
      %v1347 = vpack.c.b16 %v1329, %v1329
      %1366 = vst [vmem:[%s192] sm:$0xf] %v1330
      %1367 = vst [vmem:[%s192 + $0x4] sm:$0xf] %v1331
      %1368 = vst [vmem:[%s192 + $0x8] sm:$0xf] %v1332
      %1369 = vst [vmem:[%s192 + $0xc] sm:$0xf] %v1333
      %1370 = vst [vmem:[%s192 + $0x10] sm:$0xf] %v1334
      %1371 = vst [vmem:[%s192 + $0x14] sm:$0xf] %v1335
      %1372 = vst [vmem:[%s192 + $0x18] sm:$0xf] %v1336
      %1373 = vst [vmem:[%s192 + $0x1c] sm:$0xf] %v1337
      %1374 = vst [vmem:[%s192 + $0x20] sm:$0xf] %v1338
      %1375 = vst [vmem:[%s192 + $0x24] sm:$0xf] %v1339
      %1376 = vst [vmem:[%s192 + $0x28] sm:$0xf] %v1340
      %1377 = vst [vmem:[%s192 + $0x2c] sm:$0xf] %v1341
      %1378 = vst [vmem:[%s192 + $0x30] sm:$0xf] %v1342
      %1379 = vst [vmem:[%s192 + $0x34] sm:$0xf] %v1343
      %1380 = vst [vmem:[%s192 + $0x38] sm:$0xf] %v1344
      %1381 = vst [vmem:[%s192 + $0x3c] sm:$0xf] %v1345
      %1382 = vst [vmem:[%s192 + $0x40] sm:$0xf] %v1346
      %1383 = vst [vmem:[%s192 + $0x44] sm:$0xf] %v1347
      %s1384 = smul.u32 18, %s19
      %p1385 = scmp.lt.s32.totalorder %s18, 1
      %s1386 = scalar_select %p1385, %s18, 1
      %p1387 = scmp.lt.s32.totalorder %s1384, 35
      %s1388 = scalar_select %p1387, %s1384, 35
      %s1389 = smul.addr %s1386, 36
      %s1390 = sadd.s32 %s1388, %s1389
      %s1391 = smul.addr %s1390, 4
      %s1392 = scalar_lea.vmem %s3, %s1391
      // Predicated region
      $region33: #{conv_bn_relu.1} parent=31 // pred_check
        %p1393 = pneg %p114
      $region34: #{conv_bn_relu.1} parent=31 // pred_check_branch
        %1395 = sbr.rel (%p1393) target = $region36
      $region35: #{conv_bn_relu.1} parent=31 // pred_region
        %s1396 = smul.u32 18, %s19
      $region36: #{conv_bn_relu.1} parent=31 // pred_fallthru
        _
    $region32: #{conv_bn_relu.1} parent=5 // pred_fallthru
      _
    %p1397 = scmp.le.s32.totalorder 2, %s9
    // Predicated region
    $region37: #{conv_bn_relu.1} parent=5 // pred_check
      %p1398 = pneg %p1397
    $region38: #{conv_bn_relu.1} parent=5 // pred_check_branch
      %1400 = sbr.rel (%p1398) target = $region40
    $region39: #{conv_bn_relu.1} parent=5 // pred_region
      %s1401 = ssub.s32 %s9, 2
      // Predicated region
      $region41: #{conv_bn_relu.1} parent=39 // pred_check
        %p1402 = pneg %p120
      $region42: #{conv_bn_relu.1} parent=39 // pred_check_branch
        %1404 = sbr.rel (%p1402) target = $region44
      $region43: #{conv_bn_relu.1} parent=39 // pred_region
        %s1405 = smul.u32 18, %s21
        %p1406 = scmp.lt.s32.totalorder %s20, 1
        %s1407 = scalar_select %p1406, %s20, 1
        %p1408 = scmp.lt.s32.totalorder %s1405, 35
        %s1409 = scalar_select %p1408, %s1405, 35
        %s1410 = smul.addr %s1407, 36
        %s1411 = sadd.s32 %s1409, %s1410
        %s1412 = smul.addr %s1411, 4
        %s1413 = scalar_lea.vmem %s3, %s1412
      $region44: #{conv_bn_relu.1} parent=39 // pred_fallthru
        _
    $region40: #{conv_bn_relu.1} parent=5 // pred_fallthru
      _
  $region6: #{conv_bn_relu.1} parent=0 // loop_footer
    %s13 = sadd.s32 1, %s9
  $region7: #{conv_bn_relu.1} parent=0 // loop_footer_branch
    %8 = sbr.rel target = $region3
  $region8: #{conv_bn_relu.1} parent=0 // loop_exit
    _

</llo_original>
